<compile_context>
chip_gen: v5e
topology: v5e:2x2
jax: 0.10.0
libtpu: 0.0.40
codegen_flags: <defaults>
</compile_context>

<pallas_src>
import functools
import math

import jax
import jax.numpy as jnp
from jax.experimental import pallas as pl
from jax.experimental.pallas import tpu as pltpu

LANES = 128
SUBLANES_BF16 = 16   # bf16 packs 16 rows per (8,128) f32-equivalent tile


def _round_up(x, m):
    return ((x + m - 1) // m) * m


def _cdiv(a, b):
    return (a + b - 1) // b


def _pad2(a, rows, cols, dtype):
    a = jnp.asarray(a, jnp.float32)
    a = jnp.pad(a, ((0, rows - a.shape[0]), (0, cols - a.shape[1])))
    return a.astype(dtype)


def _apply_activation(z, name):
    # z is f32; keep all element-wise math in f32 (no bf16 VPU/EUP on v5e).
    if name == "RELU":
        return jnp.maximum(z, 0.0)
    if name == "LEAKYRELU":
        return jnp.where(z >= 0.0, z, 0.01 * z)
    if name == "ELU":
        return jnp.where(z > 0.0, z, jnp.expm1(jnp.minimum(z, 0.0)))
    if name == "GELU":
        # TODO(synk): PyTorch nn.GELU defaults to exact erf; tanh approx differs ~1e-3.
        c = math.sqrt(2.0 / math.pi)
        return 0.5 * z * (1.0 + jnp.tanh(c * (z + 0.044715 * z * z * z)))
    if name == "SELU":
        alpha = 1.6732632423543772
        scale = 1.0507009873554805
        return scale * jnp.where(z > 0.0, z, alpha * jnp.expm1(jnp.minimum(z, 0.0)))
    raise ValueError(f"unsupported activation: {name}")


def _ffnn_kernel(x_ref, *refs, num_hidden, activation):
    """refs = [W0, ..., W_{H-1}, W_out, shifts, out_ref].

    Weights are bf16 with the eval-mode BatchNorm scale already folded into
    their columns; `shifts` stacks one f32 row per layer holding
    bias*scale + (beta - mean*scale) for hidden layers and the plain bias for
    the output layer.
    """
    out_ref = refs[-1]
    shifts = refs[-2][...]                      # (L+1, max_dout_p) f32, resident
    h = x_ref[...]                              # bf16 batch tile
    z = None
    for layer in range(num_hidden + 1):
        w = refs[layer][...]                    # bf16, BN scale folded in
        n = w.shape[1]                          # static padded width
        z = jnp.dot(h, w, preferred_element_type=jnp.float32)   # bf16 MXU, f32 acc
        z = z + shifts[layer:layer + 1, :n]     # single fused epilogue add (f32)
        if layer < num_hidden:
            h = _apply_activation(z, activation).astype(jnp.bfloat16)
    out_ref[...] = z.astype(out_ref.dtype)


def ffnn_forward(x, hidden_params, out_params, activation="RELU", eps=1e-5,
                 row_tile=512):
    """FFNN forward (inference).

    hidden_params: list of (w[in,out], b[out], gamma[out], beta[out],
                            running_mean[out], running_var[out])
    out_params:    (w[in,out], b[out])
    """
    B, din = x.shape
    din_p = _round_up(din, LANES)

    # ---- fold eval-mode BatchNorm into each hidden Linear (exact) -----------
    weights = []          # bf16 padded matrices, BN scale folded into columns
    shift_rows = []       # f32 per-layer fused bias/shift vectors
    dims_p = []
    prev_p = din_p
    for (w, b, gamma, beta, mean, var) in hidden_params:
        dout = w.shape[1]
        dout_p = _round_up(dout, LANES)
        scale = jnp.asarray(gamma, jnp.float32) / jnp.sqrt(
            jnp.asarray(var, jnp.float32) + eps)
        w_folded = jnp.asarray(w, jnp.float32) * scale[None, :]
        s_folded = jnp.asarray(b, jnp.float32) * scale + (
            jnp.asarray(beta, jnp.float32) - jnp.asarray(mean, jnp.float32) * scale)
        weights.append(_pad2(w_folded, prev_p, dout_p, jnp.bfloat16))
        shift_rows.append(s_folded)
        dims_p.append(dout_p)
        prev_p = dout_p

    w_out, b_out = out_params
    dout_final = w_out.shape[1]
    dout_final_p = _round_up(dout_final, LANES)
    weights.append(_pad2(w_out, prev_p, dout_final_p, jnp.bfloat16))
    shift_rows.append(jnp.asarray(b_out, jnp.float32))
    dims_p.append(dout_final_p)

    n_layers = len(weights)                      # num_hidden + 1
    max_out_p = max(dims_p)
    shift_mat = jnp.zeros((n_layers, max_out_p), jnp.float32)
    for li, s in enumerate(shift_rows):
        shift_mat = shift_mat.at[li, :s.shape[0]].set(s)

    # ---- batch tiling: tight, bf16-sublane aligned, >=2 steps for v7x -------
    n_tiles = max(1, _cdiv(B, row_tile))
    if B >= 2 * SUBLANES_BF16:
        n_tiles = max(n_tiles, 2)                # both v7x TensorCores get work
    rt = _round_up(_cdiv(B, n_tiles), SUBLANES_BF16)
    B_p = _round_up(B, rt)
    grid = (B_p // rt,)

    x_p = _pad2(x, B_p, din_p, jnp.bfloat16)

    # ---- VMEM budget (explicit) ---------------------------------------------
    w_bytes = sum(int(w.size) * 2 for w in weights)
    shift_bytes = int(shift_mat.size) * 4
    tile_bytes = rt * din_p * 2 + rt * dout_final_p * 4        # x tile + out tile
    interm_bytes = 3 * rt * max_out_p * 4                      # in-kernel activations
    resident_bytes = 2 * (w_bytes + shift_bytes)               # conservative (2 bufs)
    vmem_needed = 2 * tile_bytes + resident_bytes + interm_bytes
    if resident_bytes + 2 * tile_bytes > (48 << 20):
        # TODO(synk): stream weights per layer instead of keeping them resident.
        raise ValueError("FFNN too large for the fully-resident kernel "
                         "(> ~48 MiB VMEM on v7x); stream weights per layer.")
    vmem_limit = int(min(max(2 * vmem_needed + (2 << 20), 16 << 20), 100 << 20))

    # ---- cost estimate --------------------------------------------------------
    flops = 0
    prev = din_p
    for dp in dims_p:
        flops += 2 * B_p * prev * dp
        prev = dp
    transc = B_p * sum(dims_p[:-1]) if activation in ("GELU", "ELU", "SELU") else 0
    bytes_acc = int(x_p.size) * 2 + w_bytes + shift_bytes + B_p * dout_final_p * 4
    cost = pl.CostEstimate(flops=flops, transcendentals=transc,
                           bytes_accessed=bytes_acc)

    kernel = functools.partial(_ffnn_kernel,
                               num_hidden=len(hidden_params),
                               activation=activation)

    def _const_spec(shape, single_buffer):
        if single_buffer:
            # Constant index_map -> single-buffer the resident operand (halves
            # its VMEM footprint; matters on v7x's 64 MiB VMEM).
            return pl.BlockSpec(shape, lambda i: (0, 0),
                                pipeline_mode=pl.Buffered(1))
        return pl.BlockSpec(shape, lambda i: (0, 0))

    def _build(single_buffer):
        in_specs = [pl.BlockSpec((rt, din_p), lambda i: (i, 0))]
        in_specs += [_const_spec(tuple(w.shape), single_buffer) for w in weights]
        in_specs += [_const_spec(tuple(shift_mat.shape), single_buffer)]
        return pl.pallas_call(
            kernel,
            out_shape=jax.ShapeDtypeStruct((B_p, dout_final_p), jnp.float32),
            grid_spec=pltpu.PrefetchScalarGridSpec(
                num_scalar_prefetch=0,
                grid=grid,
                in_specs=in_specs,
                out_specs=pl.BlockSpec((rt, dout_final_p), lambda i: (i, 0)),
            ),
            compiler_params=pltpu.CompilerParams(
                dimension_semantics=("parallel",),
                vmem_limit_bytes=vmem_limit),
            cost_estimate=cost,
        )

    flat_inputs = [x_p] + weights + [shift_mat]
    try:
        out_p = _build(single_buffer=True)(*flat_inputs)
    except Exception:
        # Portability guard: if this jax build rejects pipeline_mode=Buffered(1),
        # fall back to default double-buffered resident operands.
        out_p = _build(single_buffer=False)(*flat_inputs)

    return out_p[:B, :dout_final]


def ffnn_forward_ref(x, hidden_params, out_params, activation, eps=1e-5):
    h = x.astype(jnp.float32)
    for (w, b, gamma, beta, mean, var) in hidden_params:
        z = h @ w + b
        z = (z - mean) / jnp.sqrt(var + eps) * gamma + beta
        h = _apply_activation(z, activation)
    w, b = out_params
    return h @ w + b


if __name__ == "__main__":
    key = jax.random.PRNGKey(0)

    batch = 8
    input_size = 16
    hidden_layers = [32, 32]
    dropout_layers = [0.1, 0.0]            # identity at inference
    output_features = ["y0", "y1", "y2", "y3"]
    activation_functions = ["RELU"]        # module always uses activation_functions[0]

    keys = jax.random.split(key, len(hidden_layers) + 2)
    x = jax.random.normal(keys[0], (batch, input_size), dtype=jnp.float32)

    hidden_params = []
    din = input_size
    for li, h in enumerate(hidden_layers):
        kw, kb, kg, kbt, km, kv = jax.random.split(keys[1 + li], 6)
        w = jax.random.normal(kw, (din, h), jnp.float32) / jnp.sqrt(float(din))
        b = 0.1 * jax.random.normal(kb, (h,), jnp.float32)
        gamma = 1.0 + 0.1 * jax.random.normal(kg, (h,), jnp.float32)
        beta = 0.1 * jax.random.normal(kbt, (h,), jnp.float32)
        mean = 0.1 * jax.random.normal(km, (h,), jnp.float32)
        var = jax.random.uniform(kv, (h,), jnp.float32, minval=0.5, maxval=1.5)
        hidden_params.append((w, b, gamma, beta, mean, var))
        din = h

    kw, kb = jax.random.split(keys[-1], 2)
    w_out = jax.random.normal(kw, (din, len(output_features)),
                              jnp.float32) / jnp.sqrt(float(din))
    b_out = 0.1 * jax.random.normal(kb, (len(output_features),), jnp.float32)

    y = ffnn_forward(x, hidden_params, (w_out, b_out),
                     activation=activation_functions[0])
    y = jax.block_until_ready(y)

    y_ref = ffnn_forward_ref(x, hidden_params, (w_out, b_out),
                             activation_functions[0])
    assert y.shape == (batch, len(output_features)), y.shape
    # bf16 MXU operands with f32 accumulation -> slightly looser tolerance.
    assert jnp.allclose(y, y_ref, rtol=2e-2, atol=2e-2), (y, y_ref)

    print("KERNEL_OK")
</pallas_src>

<mosaic_0001>
module attributes {stable_mosaic.version = 11 : i64} {
  func.func @_ffnn_kernel(%arg0: i32, %arg1: memref<16x128xbf16, #tpu.memory_space<vmem>>, %arg2: memref<128x128xbf16, #tpu.memory_space<vmem>>, %arg3: memref<128x128xbf16, #tpu.memory_space<vmem>>, %arg4: memref<128x128xbf16, #tpu.memory_space<vmem>>, %arg5: memref<3x128xf32, #tpu.memory_space<vmem>>, %arg6: memref<16x128xf32, #tpu.memory_space<vmem>>) attributes {dimension_semantics = [#tpu.dimension_semantics<parallel>], iteration_bounds = array<i64: 1>, scalar_prefetch = 0 : i64, scratch_operands = 0 : i64, tpu.core_type = #tpu.core_type<tc>, window_params = [{transform_indices = @transform_0, window_bounds = array<i64: 16, 128>}, {pipeline_mode = #tpu.pipeline_mode<synchronous>, transform_indices = @transform_1, window_bounds = array<i64: 128, 128>}, {pipeline_mode = #tpu.pipeline_mode<synchronous>, transform_indices = @transform_2, window_bounds = array<i64: 128, 128>}, {pipeline_mode = #tpu.pipeline_mode<synchronous>, transform_indices = @transform_3, window_bounds = array<i64: 128, 128>}, {pipeline_mode = #tpu.pipeline_mode<synchronous>, transform_indices = @transform_4, window_bounds = array<i64: 3, 128>}, {transform_indices = @transform_5, window_bounds = array<i64: 16, 128>}]} {
    %c0 = arith.constant 0 : index
    %c0_0 = arith.constant 0 : index
    %0 = vector.load %arg5[%c0, %c0_0] : memref<3x128xf32, #tpu.memory_space<vmem>>, vector<3x128xf32>
    %c0_1 = arith.constant 0 : index
    %c0_2 = arith.constant 0 : index
    %1 = vector.load %arg1[%c0_1, %c0_2] : memref<16x128xbf16, #tpu.memory_space<vmem>>, vector<16x128xbf16>
    %c0_3 = arith.constant 0 : index
    %c0_4 = arith.constant 0 : index
    %2 = vector.load %arg2[%c0_3, %c0_4] : memref<128x128xbf16, #tpu.memory_space<vmem>>, vector<128x128xbf16>
    %cst = arith.constant dense<0.000000e+00> : vector<16x128xf32>
    %3 = tpu.matmul %1, %2, %cst {dimension_numbers = #tpu.dot_dimension_numbers<[1], [0], [0], [1], [0, 0, 1, 1], [], []>} : vector<16x128xbf16>, vector<128x128xbf16>, vector<16x128xf32> -> vector<16x128xf32>
    %4 = vector.extract_strided_slice %0 {offsets = [0, 0], sizes = [1, 128], strides = [1, 1]} : vector<3x128xf32> to vector<1x128xf32>
    %5 = vector.broadcast %4 : vector<1x128xf32> to vector<16x128xf32>
    %6 = arith.addf %3, %5 : vector<16x128xf32>
    %cst_5 = arith.constant 0.000000e+00 : f32
    %7 = vector.broadcast %cst_5 : f32 to vector<16x128xf32>
    %8 = arith.maximumf %6, %7 : vector<16x128xf32>
    %9 = arith.truncf %8 : vector<16x128xf32> to vector<16x128xbf16>
    %c0_6 = arith.constant 0 : index
    %c0_7 = arith.constant 0 : index
    %10 = vector.load %arg3[%c0_6, %c0_7] : memref<128x128xbf16, #tpu.memory_space<vmem>>, vector<128x128xbf16>
    %cst_8 = arith.constant dense<0.000000e+00> : vector<16x128xf32>
    %11 = tpu.matmul %9, %10, %cst_8 {dimension_numbers = #tpu.dot_dimension_numbers<[1], [0], [0], [1], [0, 0, 1, 1], [], []>} : vector<16x128xbf16>, vector<128x128xbf16>, vector<16x128xf32> -> vector<16x128xf32>
    %12 = vector.extract_strided_slice %0 {offsets = [1, 0], sizes = [1, 128], strides = [1, 1]} : vector<3x128xf32> to vector<1x128xf32>
    %13 = vector.broadcast %12 : vector<1x128xf32> to vector<16x128xf32>
    %14 = arith.addf %11, %13 : vector<16x128xf32>
    %cst_9 = arith.constant 0.000000e+00 : f32
    %15 = vector.broadcast %cst_9 : f32 to vector<16x128xf32>
    %16 = arith.maximumf %14, %15 : vector<16x128xf32>
    %17 = arith.truncf %16 : vector<16x128xf32> to vector<16x128xbf16>
    %c0_10 = arith.constant 0 : index
    %c0_11 = arith.constant 0 : index
    %18 = vector.load %arg4[%c0_10, %c0_11] : memref<128x128xbf16, #tpu.memory_space<vmem>>, vector<128x128xbf16>
    %cst_12 = arith.constant dense<0.000000e+00> : vector<16x128xf32>
    %19 = tpu.matmul %17, %18, %cst_12 {dimension_numbers = #tpu.dot_dimension_numbers<[1], [0], [0], [1], [0, 0, 1, 1], [], []>} : vector<16x128xbf16>, vector<128x128xbf16>, vector<16x128xf32> -> vector<16x128xf32>
    %20 = vector.extract_strided_slice %0 {offsets = [2, 0], sizes = [1, 128], strides = [1, 1]} : vector<3x128xf32> to vector<1x128xf32>
    %21 = vector.broadcast %20 : vector<1x128xf32> to vector<16x128xf32>
    %22 = arith.addf %19, %21 : vector<16x128xf32>
    %c0_13 = arith.constant 0 : index
    %c0_14 = arith.constant 0 : index
    %23 = vector.load %arg6[%c0_13, %c0_14] : memref<16x128xf32, #tpu.memory_space<vmem>>, vector<16x128xf32>
    tpu.vector_store %arg6[%c0_13, %c0_14], %22 {strides = array<i32>} : memref<16x128xf32, #tpu.memory_space<vmem>>, vector<16x128xf32>,
    return
  }
  func.func @transform_0(%arg0: i32) -> (i32, i32) {
    %c0_i32 = arith.constant 0 : i32
    %c0_i32_0 = arith.constant 0 : i32
    return %arg0, %c0_i32 : i32, i32
  }
  func.func @transform_1(%arg0: i32) -> (i32, i32) {
    %c0_i32 = arith.constant 0 : i32
    %c0_i32_0 = arith.constant 0 : i32
    %c0_i32_1 = arith.constant 0 : i32
    return %c0_i32, %c0_i32_0 : i32, i32
  }
  func.func @transform_2(%arg0: i32) -> (i32, i32) {
    %c0_i32 = arith.constant 0 : i32
    %c0_i32_0 = arith.constant 0 : i32
    %c0_i32_1 = arith.constant 0 : i32
    return %c0_i32, %c0_i32_0 : i32, i32
  }
  func.func @transform_3(%arg0: i32) -> (i32, i32) {
    %c0_i32 = arith.constant 0 : i32
    %c0_i32_0 = arith.constant 0 : i32
    %c0_i32_1 = arith.constant 0 : i32
    return %c0_i32, %c0_i32_0 : i32, i32
  }
  func.func @transform_4(%arg0: i32) -> (i32, i32) {
    %c0_i32 = arith.constant 0 : i32
    %c0_i32_0 = arith.constant 0 : i32
    %c0_i32_1 = arith.constant 0 : i32
    return %c0_i32, %c0_i32_0 : i32, i32
  }
  func.func @transform_5(%arg0: i32) -> (i32, i32) {
    %c0_i32 = arith.constant 0 : i32
    %c0_i32_0 = arith.constant 0 : i32
    return %arg0, %c0_i32 : i32, i32
  }
}

module attributes {stable_mosaic.version = 11 : i64} {
  func.func @_ffnn_kernel(%arg0: i32, %arg1: memref<16x128xbf16, #tpu.memory_space<vmem>>, %arg2: memref<128x128xbf16, #tpu.memory_space<vmem>>, %arg3: memref<128x128xbf16, #tpu.memory_space<vmem>>, %arg4: memref<128x128xbf16, #tpu.memory_space<vmem>>, %arg5: memref<3x128xf32, #tpu.memory_space<vmem>>, %arg6: memref<16x128xf32, #tpu.memory_space<vmem>>) attributes {dimension_semantics = [#tpu.dimension_semantics<parallel>], iteration_bounds = array<i64: 1>, scalar_prefetch = 0 : i64, scratch_operands = 0 : i64, tpu.core_type = #tpu.core_type<tc>, window_params = [{transform_indices = @transform_0, window_bounds = array<i64: 16, 128>}, {pipeline_mode = #tpu.pipeline_mode<synchronous>, transform_indices = @transform_1, window_bounds = array<i64: 128, 128>}, {pipeline_mode = #tpu.pipeline_mode<synchronous>, transform_indices = @transform_2, window_bounds = array<i64: 128, 128>}, {pipeline_mode = #tpu.pipeline_mode<synchronous>, transform_indices = @transform_3, window_bounds = array<i64: 128, 128>}, {pipeline_mode = #tpu.pipeline_mode<synchronous>, transform_indices = @transform_4, window_bounds = array<i64: 3, 128>}, {transform_indices = @transform_5, window_bounds = array<i64: 16, 128>}]} {
    %c0 = arith.constant 0 : index
    %c0_0 = arith.constant 0 : index
    %0 = vector.load %arg5[%c0, %c0_0] : memref<3x128xf32, #tpu.memory_space<vmem>>, vector<3x128xf32>
    %c0_1 = arith.constant 0 : index
    %c0_2 = arith.constant 0 : index
    %1 = vector.load %arg1[%c0_1, %c0_2] : memref<16x128xbf16, #tpu.memory_space<vmem>>, vector<16x128xbf16>
    %c0_3 = arith.constant 0 : index
    %c0_4 = arith.constant 0 : index
    %2 = vector.load %arg2[%c0_3, %c0_4] : memref<128x128xbf16, #tpu.memory_space<vmem>>, vector<128x128xbf16>
    %cst = arith.constant dense<0.000000e+00> : vector<16x128xf32>
    %3 = tpu.matmul %1, %2, %cst {dimension_numbers = #tpu.dot_dimension_numbers<[1], [0], [0], [1], [0, 0, 1, 1], [], []>} : vector<16x128xbf16>, vector<128x128xbf16>, vector<16x128xf32> -> vector<16x128xf32>
    %4 = vector.extract_strided_slice %0 {offsets = [0, 0], sizes = [1, 128], strides = [1, 1]} : vector<3x128xf32> to vector<1x128xf32>
    %5 = vector.broadcast %4 : vector<1x128xf32> to vector<16x128xf32>
    %6 = arith.addf %3, %5 : vector<16x128xf32>
    %cst_5 = arith.constant 0.000000e+00 : f32
    %7 = vector.broadcast %cst_5 : f32 to vector<16x128xf32>
    %8 = arith.maximumf %6, %7 : vector<16x128xf32>
    %9 = arith.truncf %8 : vector<16x128xf32> to vector<16x128xbf16>
    %c0_6 = arith.constant 0 : index
    %c0_7 = arith.constant 0 : index
    %10 = vector.load %arg3[%c0_6, %c0_7] : memref<128x128xbf16, #tpu.memory_space<vmem>>, vector<128x128xbf16>
    %cst_8 = arith.constant dense<0.000000e+00> : vector<16x128xf32>
    %11 = tpu.matmul %9, %10, %cst_8 {dimension_numbers = #tpu.dot_dimension_numbers<[1], [0], [0], [1], [0, 0, 1, 1], [], []>} : vector<16x128xbf16>, vector<128x128xbf16>, vector<16x128xf32> -> vector<16x128xf32>
    %12 = vector.extract_strided_slice %0 {offsets = [1, 0], sizes = [1, 128], strides = [1, 1]} : vector<3x128xf32> to vector<1x128xf32>
    %13 = vector.broadcast %12 : vector<1x128xf32> to vector<16x128xf32>
    %14 = arith.addf %11, %13 : vector<16x128xf32>
    %cst_9 = arith.constant 0.000000e+00 : f32
    %15 = vector.broadcast %cst_9 : f32 to vector<16x128xf32>
    %16 = arith.maximumf %14, %15 : vector<16x128xf32>
    %17 = arith.truncf %16 : vector<16x128xf32> to vector<16x128xbf16>
    %c0_10 = arith.constant 0 : index
    %c0_11 = arith.constant 0 : index
    %18 = vector.load %arg4[%c0_10, %c0_11] : memref<128x128xbf16, #tpu.memory_space<vmem>>, vector<128x128xbf16>
    %cst_12 = arith.constant dense<0.000000e+00> : vector<16x128xf32>
    %19 = tpu.matmul %17, %18, %cst_12 {dimension_numbers = #tpu.dot_dimension_numbers<[1], [0], [0], [1], [0, 0, 1, 1], [], []>} : vector<16x128xbf16>, vector<128x128xbf16>, vector<16x128xf32> -> vector<16x128xf32>
    %20 = vector.extract_strided_slice %0 {offsets = [2, 0], sizes = [1, 128], strides = [1, 1]} : vector<3x128xf32> to vector<1x128xf32>
    %21 = vector.broadcast %20 : vector<1x128xf32> to vector<16x128xf32>
    %22 = arith.addf %19, %21 : vector<16x128xf32>
    %c0_13 = arith.constant 0 : index
    %c0_14 = arith.constant 0 : index
    %23 = vector.load %arg6[%c0_13, %c0_14] : memref<16x128xf32, #tpu.memory_space<vmem>>, vector<16x128xf32>
    tpu.vector_store %arg6[%c0_13, %c0_14], %22 {strides = array<i32>} : memref<16x128xf32, #tpu.memory_space<vmem>>, vector<16x128xf32>,
    return
  }
  func.func @transform_0(%arg0: i32) -> (i32, i32) {
    %c0_i32 = arith.constant 0 : i32
    %c0_i32_0 = arith.constant 0 : i32
    return %arg0, %c0_i32 : i32, i32
  }
  func.func @transform_1(%arg0: i32) -> (i32, i32) {
    %c0_i32 = arith.constant 0 : i32
    %c0_i32_0 = arith.constant 0 : i32
    %c0_i32_1 = arith.constant 0 : i32
    return %c0_i32, %c0_i32_0 : i32, i32
  }
  func.func @transform_2(%arg0: i32) -> (i32, i32) {
    %c0_i32 = arith.constant 0 : i32
    %c0_i32_0 = arith.constant 0 : i32
    %c0_i32_1 = arith.constant 0 : i32
    return %c0_i32, %c0_i32_0 : i32, i32
  }
  func.func @transform_3(%arg0: i32) -> (i32, i32) {
    %c0_i32 = arith.constant 0 : i32
    %c0_i32_0 = arith.constant 0 : i32
    %c0_i32_1 = arith.constant 0 : i32
    return %c0_i32, %c0_i32_0 : i32, i32
  }
  func.func @transform_4(%arg0: i32) -> (i32, i32) {
    %c0_i32 = arith.constant 0 : i32
    %c0_i32_0 = arith.constant 0 : i32
    %c0_i32_1 = arith.constant 0 : i32
    return %c0_i32, %c0_i32_0 : i32, i32
  }
  func.func @transform_5(%arg0: i32) -> (i32, i32) {
    %c0_i32 = arith.constant 0 : i32
    %c0_i32_0 = arith.constant 0 : i32
    return %arg0, %c0_i32 : i32, i32
  }
}

</mosaic_0001>

<llo_original>
// kernel: tpu_custom_call.1
$region0: #{tpu_custom_call.1}
  #allocation0 [shape = 'u32[]', space=smem, size = 0x4, offset = 0x4, fixed_abs, tag = 'smem constant byte address 0x4 - core index']
  #allocation1 [shape = 'u32[72,128]{1,0:T(1,128)}', space=vmem, size = 0x9000, scoped, tag = 'internal scratch']
  %s0 = inlined_call_operand.hbm [shape: bf16[16,128], index: 0, kind: input, shape index: {}]
  %s1 = inlined_call_operand.hbm [shape: bf16[128,128], index: 1, kind: input, shape index: {}]
  %s2 = inlined_call_operand.hbm [shape: bf16[128,128], index: 2, kind: input, shape index: {}]
  %s3 = inlined_call_operand.hbm [shape: bf16[128,128], index: 3, kind: input, shape index: {}]
  %s4 = inlined_call_operand.hbm [shape: f32[3,128], index: 4, kind: input, shape index: {}]
  %s5 = inlined_call_operand.hbm [shape: f32[16,128], index: 5, kind: output, shape index: {}]
  %s6 = sld [smem:[#allocation0]]
  $region50: #{tpu_custom_call.1} parent=0
    _
  %s8 = ssub.s32 1, %s6
  %s9 = scalar_select 0, %s8, %s6
  $region1: #{tpu_custom_call.1} parent=0
    #allocation2 [shape = 'u8[4096]{0}', space=vmem, size = 0x1000, scoped, tag = 'input window, operand 0, single buffered']
    #allocation3 [shape = 's32[1]{0}', space=sflag, size = 0x4, scoped, tag = 'scoped memory for tpu_custom_call.1']
    #allocation4 [shape = 's32[1]{0}', space=sflag, size = 0x4, scoped, tag = 'scoped memory for tpu_custom_call.1']
    #allocation5 [shape = 'u8[32768]{0}', space=vmem, size = 0x8000, scoped, tag = 'input window, operand 1, single buffered']
    #allocation6 [shape = 's32[1]{0}', space=sflag, size = 0x4, scoped, tag = 'scoped memory for tpu_custom_call.1']
    #allocation7 [shape = 'u8[32768]{0}', space=vmem, size = 0x8000, scoped, tag = 'input window, operand 2, single buffered']
    #allocation8 [shape = 'u8[32768]{0}', space=vmem, size = 0x8000, scoped, tag = 'input window, operand 3, single buffered']
    #allocation9 [shape = 's32[1]{0}', space=sflag, size = 0x4, scoped, tag = 'scoped memory for tpu_custom_call.1']
    #allocation10 [shape = 'u8[2048]{0}', space=vmem, size = 0x800, scoped, tag = 'input window, operand 4, single buffered']
    #allocation11 [shape = 'u8[8192]{0}', space=vmem, size = 0x2000, scoped, tag = 'output window, operand 0, single buffered']
    %10 = vsyncpa [#allocation3], 0
    %11 = vsyncpa [#allocation6], 0
    %12 = vsyncpa [#allocation9], 0
    %13 = vsyncpa [#allocation4], 0
    // Predicated region
    $region2: #{tpu_custom_call.1} parent=1 // pred_check
      _
    $region3: #{tpu_custom_call.1} parent=1 // pred_check_branch
      %15 = sbr.rel (0) target = $region5
    $region4: #{tpu_custom_call.1} parent=1 // pred_region
      %17 = vsyncadd [#allocation3], 0
      %s18 = sshll.u32 %s0, 4
      %s19 = int_to_ptr.hbm [resolvable:$true] %s18
      %s20 = sshll.u32 [#allocation2], 4
      %s21 = int_to_ptr.vmem [resolvable:$true] %s20
      %26 = dma.hbm_to_vmem [thread:$0]  %s19, 128, %s21, [#allocation3], 64, 64, 4
    $region5: #{tpu_custom_call.1} parent=1 // pred_fallthru
      _
    // Predicated region
    $region6: #{tpu_custom_call.1} parent=1 // pred_check
      _
    $region7: #{tpu_custom_call.1} parent=1 // pred_check_branch
      %28 = sbr.rel (0) target = $region9
    $region8: #{tpu_custom_call.1} parent=1 // pred_region
      %30 = vsyncadd [#allocation6], 0
      %s31 = sshll.u32 %s1, 4
      %s32 = int_to_ptr.hbm [resolvable:$true] %s31
      %s33 = sshll.u32 [#allocation5], 4
      %s34 = int_to_ptr.vmem [resolvable:$true] %s33
      %39 = dma.hbm_to_vmem [thread:$0]  %s32, 1024, %s34, [#allocation6], 64, 64, 4
    $region9: #{tpu_custom_call.1} parent=1 // pred_fallthru
      _
    // Predicated region
    $region10: #{tpu_custom_call.1} parent=1 // pred_check
      _
    $region11: #{tpu_custom_call.1} parent=1 // pred_check_branch
      %41 = sbr.rel (0) target = $region13
    $region12: #{tpu_custom_call.1} parent=1 // pred_region
      %43 = vsyncadd [#allocation6], 0
      %s44 = sshll.u32 %s2, 4
      %s45 = int_to_ptr.hbm [resolvable:$true] %s44
      %s46 = sshll.u32 [#allocation7], 4
      %s47 = int_to_ptr.vmem [resolvable:$true] %s46
      %52 = dma.hbm_to_vmem [thread:$0]  %s45, 1024, %s47, [#allocation6], 64, 64, 4
    $region13: #{tpu_custom_call.1} parent=1 // pred_fallthru
      _
    // Predicated region
    $region14: #{tpu_custom_call.1} parent=1 // pred_check
      _
    $region15: #{tpu_custom_call.1} parent=1 // pred_check_branch
      %54 = sbr.rel (0) target = $region17
    $region16: #{tpu_custom_call.1} parent=1 // pred_region
      %56 = vsyncadd [#allocation9], 0
      %s57 = sshll.u32 %s3, 4
      %s58 = int_to_ptr.hbm [resolvable:$true] %s57
      %s59 = sshll.u32 [#allocation8], 4
      %s60 = int_to_ptr.vmem [resolvable:$true] %s59
      %65 = dma.hbm_to_vmem [thread:$0]  %s58, 1024, %s60, [#allocation9], 64, 64, 4
    $region17: #{tpu_custom_call.1} parent=1 // pred_fallthru
      _
    // Predicated region
    $region18: #{tpu_custom_call.1} parent=1 // pred_check
      _
    $region19: #{tpu_custom_call.1} parent=1 // pred_check_branch
      %67 = sbr.rel (0) target = $region21
    $region20: #{tpu_custom_call.1} parent=1 // pred_region
      %69 = vsyncadd [#allocation9], 0
      %s71 = sshll.u32 %s4, 4
      %s72 = int_to_ptr.hbm [resolvable:$true] %s71
      %s73 = sshll.u32 [#allocation10], 4
      %s74 = int_to_ptr.vmem [resolvable:$true] %s73
      %76 = dma.hbm_to_vmem [thread:$0]  %s72, 64, %s74, [#allocation9]
    $region21: #{tpu_custom_call.1} parent=1 // pred_fallthru
      _
    // Predicated region
    $region22: #{tpu_custom_call.1} parent=1 // pred_check
      _
    $region23: #{tpu_custom_call.1} parent=1 // pred_check_branch
      %78 = sbr.rel (0) target = $region25
    $region24: #{tpu_custom_call.1} parent=1 // pred_region
      %80 = dma.done [#allocation3], 128
    $region25: #{tpu_custom_call.1} parent=1 // pred_fallthru
      _
    // Predicated region
    $region26: #{tpu_custom_call.1} parent=1 // pred_check
      _
    $region27: #{tpu_custom_call.1} parent=1 // pred_check_branch
      %82 = sbr.rel (0) target = $region29
    $region28: #{tpu_custom_call.1} parent=1 // pred_region
      %84 = dma.done [#allocation6], 1024
    $region29: #{tpu_custom_call.1} parent=1 // pred_fallthru
      _
    // Predicated region
    $region30: #{tpu_custom_call.1} parent=1 // pred_check
      _
    $region31: #{tpu_custom_call.1} parent=1 // pred_check_branch
      %86 = sbr.rel (0) target = $region33
    $region32: #{tpu_custom_call.1} parent=1 // pred_region
      %88 = dma.done [#allocation6], 1024
    $region33: #{tpu_custom_call.1} parent=1 // pred_fallthru
      _
    // Predicated region
    $region34: #{tpu_custom_call.1} parent=1 // pred_check
      _
    $region35: #{tpu_custom_call.1} parent=1 // pred_check_branch
      %90 = sbr.rel (0) target = $region37
    $region36: #{tpu_custom_call.1} parent=1 // pred_region
      %92 = dma.done [#allocation9], 1024
    $region37: #{tpu_custom_call.1} parent=1 // pred_fallthru
      _
    // Predicated region
    $region38: #{tpu_custom_call.1} parent=1 // pred_check
      _
    $region39: #{tpu_custom_call.1} parent=1 // pred_check_branch
      %94 = sbr.rel (0) target = $region41
    $region40: #{tpu_custom_call.1} parent=1 // pred_region
      %96 = dma.done [#allocation9], 64
    $region41: #{tpu_custom_call.1} parent=1 // pred_fallthru
      _
    %v97 = vld [vmem:[#allocation10] sm:$0x7]
    %v98 = vld [vmem:[#allocation2] sm:$0xf]
    %v99 = vld [vmem:[#allocation2 + $0x4] sm:$0xf]
    %v100 = vld [vmem:[#allocation5] sm:$0xf]
    %v101 = vld [vmem:[#allocation5 + $0x4] sm:$0xf]
    %v102 = vld [vmem:[#allocation5 + $0x8] sm:$0xf]
    %v103 = vld [vmem:[#allocation5 + $0xc] sm:$0xf]
    %v104 = vld [vmem:[#allocation5 + $0x10] sm:$0xf]
    %v105 = vld [vmem:[#allocation5 + $0x14] sm:$0xf]
    %v106 = vld [vmem:[#allocation5 + $0x18] sm:$0xf]
    %v107 = vld [vmem:[#allocation5 + $0x1c] sm:$0xf]
    %v108 = vld [vmem:[#allocation5 + $0x20] sm:$0xf]
    %v109 = vld [vmem:[#allocation5 + $0x24] sm:$0xf]
    %v110 = vld [vmem:[#allocation5 + $0x28] sm:$0xf]
    %v111 = vld [vmem:[#allocation5 + $0x2c] sm:$0xf]
    %v112 = vld [vmem:[#allocation5 + $0x30] sm:$0xf]
    %v113 = vld [vmem:[#allocation5 + $0x34] sm:$0xf]
    %v114 = vld [vmem:[#allocation5 + $0x38] sm:$0xf]
    %v115 = vld [vmem:[#allocation5 + $0x3c] sm:$0xf]
    %v116 = vperm.slane %v97, 0
    %v119 = vunpack.c.l.b16 %v98
    %v120 = vunpack.c.l.b16 %v99
    %v121 = vpack.c.b16 %v120, %v119
    %v139 = vunpack.c.l.b16 %v100
    %v140 = vunpack.c.l.b16 %v101
    %v141 = vunpack.c.l.b16 %v102
    %v142 = vunpack.c.l.b16 %v103
    %v143 = vunpack.c.l.b16 %v104
    %v144 = vunpack.c.l.b16 %v105
    %v145 = vunpack.c.l.b16 %v106
    %v146 = vunpack.c.l.b16 %v107
    %v147 = vunpack.c.l.b16 %v108
    %v148 = vunpack.c.l.b16 %v109
    %v149 = vunpack.c.l.b16 %v110
    %v150 = vunpack.c.l.b16 %v111
    %v151 = vunpack.c.l.b16 %v112
    %v152 = vunpack.c.l.b16 %v113
    %v153 = vunpack.c.l.b16 %v114
    %v154 = vunpack.c.l.b16 %v115
    %v155 = vpack.c.b16 %v140, %v139
    %v156 = vpack.c.b16 %v142, %v141
    %v157 = vpack.c.b16 %v144, %v143
    %v158 = vpack.c.b16 %v146, %v145
    %v159 = vpack.c.b16 %v148, %v147
    %v160 = vpack.c.b16 %v150, %v149
    %v161 = vpack.c.b16 %v152, %v151
    %v162 = vpack.c.b16 %v154, %v153
    %171 = vmatpush.bf16.msra.mxu0 %v162
    %172 = vmatpush.bf16.msra.mxu0 %v161
    %173 = vmatpush.bf16.msra.mxu0 %v160
    %174 = vmatpush.bf16.msra.mxu0 %v159
    %175 = vmatpush.bf16.msra.mxu0 %v158
    %176 = vmatpush.bf16.msra.mxu0 %v157
    %177 = vmatpush.bf16.msra.mxu0 %v156
    %178 = vmatpush.bf16.msra.mxu0 %v155
    %179 = vmatmul.bf16.gmra.mxu0 %v121
    %v180 = vpop.f32.mrf.mxu0
    %v181 = vadd.f32 %v116, %v180
    %v182 = vpop.f32.mrf.mxu0
    %v183 = vadd.f32 %v116, %v182
    %184 = vdwg.mxu0
    %v185 = vmax.f32 %v181, 0.0
    %v186 = vmax.f32 %v183, 0.0
    %v187 = vpack.c.bf16 %v186, %v185
    %v188 = vld [vmem:[#allocation7] sm:$0xf]
    %v189 = vld [vmem:[#allocation7 + $0x4] sm:$0xf]
    %v190 = vld [vmem:[#allocation7 + $0x8] sm:$0xf]
    %v191 = vld [vmem:[#allocation7 + $0xc] sm:$0xf]
    %v192 = vld [vmem:[#allocation7 + $0x10] sm:$0xf]
    %v193 = vld [vmem:[#allocation7 + $0x14] sm:$0xf]
    %v194 = vld [vmem:[#allocation7 + $0x18] sm:$0xf]
    %v195 = vld [vmem:[#allocation7 + $0x1c] sm:$0xf]
    %v196 = vld [vmem:[#allocation7 + $0x20] sm:$0xf]
    %v197 = vld [vmem:[#allocation7 + $0x24] sm:$0xf]
    %v198 = vld [vmem:[#allocation7 + $0x28] sm:$0xf]
    %v199 = vld [vmem:[#allocation7 + $0x2c] sm:$0xf]
    %v200 = vld [vmem:[#allocation7 + $0x30] sm:$0xf]
    %v201 = vld [vmem:[#allocation7 + $0x34] sm:$0xf]
    %v202 = vld [vmem:[#allocation7 + $0x38] sm:$0xf]
    %v203 = vld [vmem:[#allocation7 + $0x3c] sm:$0xf]
    %v204 = vperm.slane %v97, 1
    %v221 = vunpack.c.l.b16 %v188
    %v222 = vunpack.c.l.b16 %v189
    %v223 = vunpack.c.l.b16 %v190
    %v224 = vunpack.c.l.b16 %v191
    %v225 = vunpack.c.l.b16 %v192
    %v226 = vunpack.c.l.b16 %v193
    %v227 = vunpack.c.l.b16 %v194
    %v228 = vunpack.c.l.b16 %v195
    %v229 = vunpack.c.l.b16 %v196
    %v230 = vunpack.c.l.b16 %v197
    %v231 = vunpack.c.l.b16 %v198
    %v232 = vunpack.c.l.b16 %v199
    %v233 = vunpack.c.l.b16 %v200
    %v234 = vunpack.c.l.b16 %v201
    %v235 = vunpack.c.l.b16 %v202
    %v236 = vunpack.c.l.b16 %v203
    %v237 = vpack.c.b16 %v222, %v221
    %v238 = vpack.c.b16 %v224, %v223
    %v239 = vpack.c.b16 %v226, %v225
    %v240 = vpack.c.b16 %v228, %v227
    %v241 = vpack.c.b16 %v230, %v229
    %v242 = vpack.c.b16 %v232, %v231
    %v243 = vpack.c.b16 %v234, %v233
    %v244 = vpack.c.b16 %v236, %v235
    %253 = vmatpush.bf16.msra.mxu0 %v244
    %254 = vmatpush.bf16.msra.mxu0 %v243
    %255 = vmatpush.bf16.msra.mxu0 %v242
    %256 = vmatpush.bf16.msra.mxu0 %v241
    %257 = vmatpush.bf16.msra.mxu0 %v240
    %258 = vmatpush.bf16.msra.mxu0 %v239
    %259 = vmatpush.bf16.msra.mxu0 %v238
    %260 = vmatpush.bf16.msra.mxu0 %v237
    %261 = vmatmul.bf16.gmra.mxu0 %v187
    %v262 = vpop.f32.mrf.mxu0
    %v263 = vadd.f32 %v204, %v262
    %v264 = vpop.f32.mrf.mxu0
    %v265 = vadd.f32 %v204, %v264
    %266 = vdwg.mxu0
    %v267 = vmax.f32 %v263, 0.0
    %v268 = vmax.f32 %v265, 0.0
    %v269 = vpack.c.bf16 %v268, %v267
    %v270 = vld [vmem:[#allocation8] sm:$0xf]
    %v271 = vld [vmem:[#allocation8 + $0x4] sm:$0xf]
    %v272 = vld [vmem:[#allocation8 + $0x8] sm:$0xf]
    %v273 = vld [vmem:[#allocation8 + $0xc] sm:$0xf]
    %v274 = vld [vmem:[#allocation8 + $0x10] sm:$0xf]
    %v275 = vld [vmem:[#allocation8 + $0x14] sm:$0xf]
    %v276 = vld [vmem:[#allocation8 + $0x18] sm:$0xf]
    %v277 = vld [vmem:[#allocation8 + $0x1c] sm:$0xf]
    %v278 = vld [vmem:[#allocation8 + $0x20] sm:$0xf]
    %v279 = vld [vmem:[#allocation8 + $0x24] sm:$0xf]
    %v280 = vld [vmem:[#allocation8 + $0x28] sm:$0xf]
    %v281 = vld [vmem:[#allocation8 + $0x2c] sm:$0xf]
    %v282 = vld [vmem:[#allocation8 + $0x30] sm:$0xf]
    %v283 = vld [vmem:[#allocation8 + $0x34] sm:$0xf]
    %v284 = vld [vmem:[#allocation8 + $0x38] sm:$0xf]
    %v285 = vld [vmem:[#allocation8 + $0x3c] sm:$0xf]
    %v286 = vperm.slane %v97, 2
    %v303 = vunpack.c.l.b16 %v270
    %v304 = vunpack.c.l.b16 %v271
    %v305 = vunpack.c.l.b16 %v272
    %v306 = vunpack.c.l.b16 %v273
    %v307 = vunpack.c.l.b16 %v274
    %v308 = vunpack.c.l.b16 %v275
    %v309 = vunpack.c.l.b16 %v276
    %v310 = vunpack.c.l.b16 %v277
    %v311 = vunpack.c.l.b16 %v278
    %v312 = vunpack.c.l.b16 %v279
    %v313 = vunpack.c.l.b16 %v280
    %v314 = vunpack.c.l.b16 %v281
    %v315 = vunpack.c.l.b16 %v282
    %v316 = vunpack.c.l.b16 %v283
    %v317 = vunpack.c.l.b16 %v284
    %v318 = vunpack.c.l.b16 %v285
    %v319 = vpack.c.b16 %v304, %v303
    %v320 = vpack.c.b16 %v306, %v305
    %v321 = vpack.c.b16 %v308, %v307
    %v322 = vpack.c.b16 %v310, %v309
    %v323 = vpack.c.b16 %v312, %v311
    %v324 = vpack.c.b16 %v314, %v313
    %v325 = vpack.c.b16 %v316, %v315
    %v326 = vpack.c.b16 %v318, %v317
    %335 = vmatpush.bf16.msra.mxu0 %v326
    %336 = vmatpush.bf16.msra.mxu0 %v325
    %337 = vmatpush.bf16.msra.mxu0 %v324
    %338 = vmatpush.bf16.msra.mxu0 %v323
    %339 = vmatpush.bf16.msra.mxu0 %v322
    %340 = vmatpush.bf16.msra.mxu0 %v321
    %341 = vmatpush.bf16.msra.mxu0 %v320
    %342 = vmatpush.bf16.msra.mxu0 %v319
    %343 = vmatmul.bf16.gmra.mxu0 %v269
    %v344 = vpop.f32.mrf.mxu0
    %v345 = vadd.f32 %v286, %v344
    %v346 = vpop.f32.mrf.mxu0
    %v347 = vadd.f32 %v286, %v346
    %348 = vdwg.mxu0
    %349 = vst [vmem:[#allocation11] sm:$0xff] %v345
    %350 = vst [vmem:[#allocation11 + $0x8] sm:$0xff] %v347
    // Predicated region
    $region42: #{tpu_custom_call.1} parent=1 // pred_check
      _
    $region43: #{tpu_custom_call.1} parent=1 // pred_check_branch
      %352 = sbr.rel (0) target = $region45
    $region44: #{tpu_custom_call.1} parent=1 // pred_region
      %354 = vsyncadd [#allocation4], 0
      %s355 = sshll.u32 [#allocation11], 4
      %s356 = int_to_ptr.vmem [resolvable:$true] %s355
      %s357 = sshll.u32 %s5, 4
      %s358 = int_to_ptr.hbm [resolvable:$true] %s357
      %363 = dma.vmem_to_hbm [thread:$0]  %s356, 256, %s358, [#allocation4], 128, 128, 8
    $region45: #{tpu_custom_call.1} parent=1 // pred_fallthru
      _
    // Predicated region
    $region46: #{tpu_custom_call.1} parent=1 // pred_check
      _
    $region47: #{tpu_custom_call.1} parent=1 // pred_check_branch
      %365 = sbr.rel (0) target = $region49
    $region48: #{tpu_custom_call.1} parent=1 // pred_region
      %367 = dma.done [#allocation4], 256
    $region49: #{tpu_custom_call.1} parent=1 // pred_fallthru
      _
    %368 = vsyncpa [#allocation3], 1
    %369 = vsyncpa [#allocation6], 1
    %370 = vsyncpa [#allocation9], 1
    %371 = vsyncpa [#allocation4], 1

// kernel: tpu_custom_call.1
$region0: #{tpu_custom_call.1}
  #allocation0 [shape = 'u32[]', space=smem, size = 0x4, offset = 0x4, fixed_abs, tag = 'smem constant byte address 0x4 - core index']
  #allocation1 [shape = 'u32[72,128]{1,0:T(1,128)}', space=vmem, size = 0x9000, scoped, tag = 'internal scratch']
  %s0 = inlined_call_operand.hbm [shape: bf16[16,128], index: 0, kind: input, shape index: {}]
  %s1 = inlined_call_operand.hbm [shape: bf16[128,128], index: 1, kind: input, shape index: {}]
  %s2 = inlined_call_operand.hbm [shape: bf16[128,128], index: 2, kind: input, shape index: {}]
  %s3 = inlined_call_operand.hbm [shape: bf16[128,128], index: 3, kind: input, shape index: {}]
  %s4 = inlined_call_operand.hbm [shape: f32[3,128], index: 4, kind: input, shape index: {}]
  %s5 = inlined_call_operand.hbm [shape: f32[16,128], index: 5, kind: output, shape index: {}]
  %s6 = sld [smem:[#allocation0]]
  $region50: #{tpu_custom_call.1} parent=0
    _
  %s8 = ssub.s32 1, %s6
  %s9 = scalar_select 0, %s8, %s6
  $region1: #{tpu_custom_call.1} parent=0
    #allocation2 [shape = 'u8[4096]{0}', space=vmem, size = 0x1000, scoped, tag = 'input window, operand 0, single buffered']
    #allocation3 [shape = 's32[1]{0}', space=sflag, size = 0x4, scoped, tag = 'scoped memory for tpu_custom_call.1']
    #allocation4 [shape = 's32[1]{0}', space=sflag, size = 0x4, scoped, tag = 'scoped memory for tpu_custom_call.1']
    #allocation5 [shape = 'u8[32768]{0}', space=vmem, size = 0x8000, scoped, tag = 'input window, operand 1, single buffered']
    #allocation6 [shape = 's32[1]{0}', space=sflag, size = 0x4, scoped, tag = 'scoped memory for tpu_custom_call.1']
    #allocation7 [shape = 'u8[32768]{0}', space=vmem, size = 0x8000, scoped, tag = 'input window, operand 2, single buffered']
    #allocation8 [shape = 'u8[32768]{0}', space=vmem, size = 0x8000, scoped, tag = 'input window, operand 3, single buffered']
    #allocation9 [shape = 's32[1]{0}', space=sflag, size = 0x4, scoped, tag = 'scoped memory for tpu_custom_call.1']
    #allocation10 [shape = 'u8[2048]{0}', space=vmem, size = 0x800, scoped, tag = 'input window, operand 4, single buffered']
    #allocation11 [shape = 'u8[8192]{0}', space=vmem, size = 0x2000, scoped, tag = 'output window, operand 0, single buffered']
    %10 = vsyncpa [#allocation3], 0
    %11 = vsyncpa [#allocation6], 0
    %12 = vsyncpa [#allocation9], 0
    %13 = vsyncpa [#allocation4], 0
    // Predicated region
    $region2: #{tpu_custom_call.1} parent=1 // pred_check
      _
    $region3: #{tpu_custom_call.1} parent=1 // pred_check_branch
      %15 = sbr.rel (0) target = $region5
    $region4: #{tpu_custom_call.1} parent=1 // pred_region
      %17 = vsyncadd [#allocation3], 0
      %s18 = sshll.u32 %s0, 4
      %s19 = int_to_ptr.hbm [resolvable:$true] %s18
      %s20 = sshll.u32 [#allocation2], 4
      %s21 = int_to_ptr.vmem [resolvable:$true] %s20
      %26 = dma.hbm_to_vmem [thread:$0]  %s19, 128, %s21, [#allocation3], 64, 64, 4
    $region5: #{tpu_custom_call.1} parent=1 // pred_fallthru
      _
    // Predicated region
    $region6: #{tpu_custom_call.1} parent=1 // pred_check
      _
    $region7: #{tpu_custom_call.1} parent=1 // pred_check_branch
      %28 = sbr.rel (0) target = $region9
    $region8: #{tpu_custom_call.1} parent=1 // pred_region
      %30 = vsyncadd [#allocation6], 0
      %s31 = sshll.u32 %s1, 4
      %s32 = int_to_ptr.hbm [resolvable:$true] %s31
      %s33 = sshll.u32 [#allocation5], 4
      %s34 = int_to_ptr.vmem [resolvable:$true] %s33
      %39 = dma.hbm_to_vmem [thread:$0]  %s32, 1024, %s34, [#allocation6], 64, 64, 4
    $region9: #{tpu_custom_call.1} parent=1 // pred_fallthru
      _
    // Predicated region
    $region10: #{tpu_custom_call.1} parent=1 // pred_check
      _
    $region11: #{tpu_custom_call.1} parent=1 // pred_check_branch
      %41 = sbr.rel (0) target = $region13
    $region12: #{tpu_custom_call.1} parent=1 // pred_region
      %43 = vsyncadd [#allocation6], 0
      %s44 = sshll.u32 %s2, 4
      %s45 = int_to_ptr.hbm [resolvable:$true] %s44
      %s46 = sshll.u32 [#allocation7], 4
      %s47 = int_to_ptr.vmem [resolvable:$true] %s46
      %52 = dma.hbm_to_vmem [thread:$0]  %s45, 1024, %s47, [#allocation6], 64, 64, 4
    $region13: #{tpu_custom_call.1} parent=1 // pred_fallthru
      _
    // Predicated region
    $region14: #{tpu_custom_call.1} parent=1 // pred_check
      _
    $region15: #{tpu_custom_call.1} parent=1 // pred_check_branch
      %54 = sbr.rel (0) target = $region17
    $region16: #{tpu_custom_call.1} parent=1 // pred_region
      %56 = vsyncadd [#allocation9], 0
      %s57 = sshll.u32 %s3, 4
      %s58 = int_to_ptr.hbm [resolvable:$true] %s57
      %s59 = sshll.u32 [#allocation8], 4
      %s60 = int_to_ptr.vmem [resolvable:$true] %s59
      %65 = dma.hbm_to_vmem [thread:$0]  %s58, 1024, %s60, [#allocation9], 64, 64, 4
    $region17: #{tpu_custom_call.1} parent=1 // pred_fallthru
      _
    // Predicated region
    $region18: #{tpu_custom_call.1} parent=1 // pred_check
      _
    $region19: #{tpu_custom_call.1} parent=1 // pred_check_branch
      %67 = sbr.rel (0) target = $region21
    $region20: #{tpu_custom_call.1} parent=1 // pred_region
      %69 = vsyncadd [#allocation9], 0
      %s71 = sshll.u32 %s4, 4
      %s72 = int_to_ptr.hbm [resolvable:$true] %s71
      %s73 = sshll.u32 [#allocation10], 4
      %s74 = int_to_ptr.vmem [resolvable:$true] %s73
      %76 = dma.hbm_to_vmem [thread:$0]  %s72, 64, %s74, [#allocation9]
    $region21: #{tpu_custom_call.1} parent=1 // pred_fallthru
      _
    // Predicated region
    $region22: #{tpu_custom_call.1} parent=1 // pred_check
      _
    $region23: #{tpu_custom_call.1} parent=1 // pred_check_branch
      %78 = sbr.rel (0) target = $region25
    $region24: #{tpu_custom_call.1} parent=1 // pred_region
      %80 = dma.done [#allocation3], 128
    $region25: #{tpu_custom_call.1} parent=1 // pred_fallthru
      _
    // Predicated region
    $region26: #{tpu_custom_call.1} parent=1 // pred_check
      _
    $region27: #{tpu_custom_call.1} parent=1 // pred_check_branch
      %82 = sbr.rel (0) target = $region29
    $region28: #{tpu_custom_call.1} parent=1 // pred_region
      %84 = dma.done [#allocation6], 1024
    $region29: #{tpu_custom_call.1} parent=1 // pred_fallthru
      _
    // Predicated region
    $region30: #{tpu_custom_call.1} parent=1 // pred_check
      _
    $region31: #{tpu_custom_call.1} parent=1 // pred_check_branch
      %86 = sbr.rel (0) target = $region33
    $region32: #{tpu_custom_call.1} parent=1 // pred_region
      %88 = dma.done [#allocation6], 1024
    $region33: #{tpu_custom_call.1} parent=1 // pred_fallthru
      _
    // Predicated region
    $region34: #{tpu_custom_call.1} parent=1 // pred_check
      _
    $region35: #{tpu_custom_call.1} parent=1 // pred_check_branch
      %90 = sbr.rel (0) target = $region37
    $region36: #{tpu_custom_call.1} parent=1 // pred_region
      %92 = dma.done [#allocation9], 1024
    $region37: #{tpu_custom_call.1} parent=1 // pred_fallthru
      _
    // Predicated region
    $region38: #{tpu_custom_call.1} parent=1 // pred_check
      _
    $region39: #{tpu_custom_call.1} parent=1 // pred_check_branch
      %94 = sbr.rel (0) target = $region41
    $region40: #{tpu_custom_call.1} parent=1 // pred_region
      %96 = dma.done [#allocation9], 64
    $region41: #{tpu_custom_call.1} parent=1 // pred_fallthru
      _
    %v97 = vld [vmem:[#allocation10] sm:$0x7]
    %v98 = vld [vmem:[#allocation2] sm:$0xf]
    %v99 = vld [vmem:[#allocation2 + $0x4] sm:$0xf]
    %v100 = vld [vmem:[#allocation5] sm:$0xf]
    %v101 = vld [vmem:[#allocation5 + $0x4] sm:$0xf]
    %v102 = vld [vmem:[#allocation5 + $0x8] sm:$0xf]
    %v103 = vld [vmem:[#allocation5 + $0xc] sm:$0xf]
    %v104 = vld [vmem:[#allocation5 + $0x10] sm:$0xf]
    %v105 = vld [vmem:[#allocation5 + $0x14] sm:$0xf]
    %v106 = vld [vmem:[#allocation5 + $0x18] sm:$0xf]
    %v107 = vld [vmem:[#allocation5 + $0x1c] sm:$0xf]
    %v108 = vld [vmem:[#allocation5 + $0x20] sm:$0xf]
    %v109 = vld [vmem:[#allocation5 + $0x24] sm:$0xf]
    %v110 = vld [vmem:[#allocation5 + $0x28] sm:$0xf]
    %v111 = vld [vmem:[#allocation5 + $0x2c] sm:$0xf]
    %v112 = vld [vmem:[#allocation5 + $0x30] sm:$0xf]
    %v113 = vld [vmem:[#allocation5 + $0x34] sm:$0xf]
    %v114 = vld [vmem:[#allocation5 + $0x38] sm:$0xf]
    %v115 = vld [vmem:[#allocation5 + $0x3c] sm:$0xf]
    %v116 = vperm.slane %v97, 0
    %v119 = vunpack.c.l.b16 %v98
    %v120 = vunpack.c.l.b16 %v99
    %v121 = vpack.c.b16 %v120, %v119
    %v139 = vunpack.c.l.b16 %v100
    %v140 = vunpack.c.l.b16 %v101
    %v141 = vunpack.c.l.b16 %v102
    %v142 = vunpack.c.l.b16 %v103
    %v143 = vunpack.c.l.b16 %v104
    %v144 = vunpack.c.l.b16 %v105
    %v145 = vunpack.c.l.b16 %v106
    %v146 = vunpack.c.l.b16 %v107
    %v147 = vunpack.c.l.b16 %v108
    %v148 = vunpack.c.l.b16 %v109
    %v149 = vunpack.c.l.b16 %v110
    %v150 = vunpack.c.l.b16 %v111
    %v151 = vunpack.c.l.b16 %v112
    %v152 = vunpack.c.l.b16 %v113
    %v153 = vunpack.c.l.b16 %v114
    %v154 = vunpack.c.l.b16 %v115
    %v155 = vpack.c.b16 %v140, %v139
    %v156 = vpack.c.b16 %v142, %v141
    %v157 = vpack.c.b16 %v144, %v143
    %v158 = vpack.c.b16 %v146, %v145
    %v159 = vpack.c.b16 %v148, %v147
    %v160 = vpack.c.b16 %v150, %v149
    %v161 = vpack.c.b16 %v152, %v151
    %v162 = vpack.c.b16 %v154, %v153
    %171 = vmatpush.bf16.msra.mxu0 %v162
    %172 = vmatpush.bf16.msra.mxu0 %v161
    %173 = vmatpush.bf16.msra.mxu0 %v160
    %174 = vmatpush.bf16.msra.mxu0 %v159
    %175 = vmatpush.bf16.msra.mxu0 %v158
    %176 = vmatpush.bf16.msra.mxu0 %v157
    %177 = vmatpush.bf16.msra.mxu0 %v156
    %178 = vmatpush.bf16.msra.mxu0 %v155
    %179 = vmatmul.bf16.gmra.mxu0 %v121
    %v180 = vpop.f32.mrf.mxu0
    %v181 = vadd.f32 %v116, %v180
    %v182 = vpop.f32.mrf.mxu0
    %v183 = vadd.f32 %v116, %v182
    %184 = vdwg.mxu0
    %v185 = vmax.f32 %v181, 0.0
    %v186 = vmax.f32 %v183, 0.0
    %v187 = vpack.c.bf16 %v186, %v185
    %v188 = vld [vmem:[#allocation7] sm:$0xf]
    %v189 = vld [vmem:[#allocation7 + $0x4] sm:$0xf]
    %v190 = vld [vmem:[#allocation7 + $0x8] sm:$0xf]
    %v191 = vld [vmem:[#allocation7 + $0xc] sm:$0xf]
    %v192 = vld [vmem:[#allocation7 + $0x10] sm:$0xf]
    %v193 = vld [vmem:[#allocation7 + $0x14] sm:$0xf]
    %v194 = vld [vmem:[#allocation7 + $0x18] sm:$0xf]
    %v195 = vld [vmem:[#allocation7 + $0x1c] sm:$0xf]
    %v196 = vld [vmem:[#allocation7 + $0x20] sm:$0xf]
    %v197 = vld [vmem:[#allocation7 + $0x24] sm:$0xf]
    %v198 = vld [vmem:[#allocation7 + $0x28] sm:$0xf]
    %v199 = vld [vmem:[#allocation7 + $0x2c] sm:$0xf]
    %v200 = vld [vmem:[#allocation7 + $0x30] sm:$0xf]
    %v201 = vld [vmem:[#allocation7 + $0x34] sm:$0xf]
    %v202 = vld [vmem:[#allocation7 + $0x38] sm:$0xf]
    %v203 = vld [vmem:[#allocation7 + $0x3c] sm:$0xf]
    %v204 = vperm.slane %v97, 1
    %v221 = vunpack.c.l.b16 %v188
    %v222 = vunpack.c.l.b16 %v189
    %v223 = vunpack.c.l.b16 %v190
    %v224 = vunpack.c.l.b16 %v191
    %v225 = vunpack.c.l.b16 %v192
    %v226 = vunpack.c.l.b16 %v193
    %v227 = vunpack.c.l.b16 %v194
    %v228 = vunpack.c.l.b16 %v195
    %v229 = vunpack.c.l.b16 %v196
    %v230 = vunpack.c.l.b16 %v197
    %v231 = vunpack.c.l.b16 %v198
    %v232 = vunpack.c.l.b16 %v199
    %v233 = vunpack.c.l.b16 %v200
    %v234 = vunpack.c.l.b16 %v201
    %v235 = vunpack.c.l.b16 %v202
    %v236 = vunpack.c.l.b16 %v203
    %v237 = vpack.c.b16 %v222, %v221
    %v238 = vpack.c.b16 %v224, %v223
    %v239 = vpack.c.b16 %v226, %v225
    %v240 = vpack.c.b16 %v228, %v227
    %v241 = vpack.c.b16 %v230, %v229
    %v242 = vpack.c.b16 %v232, %v231
    %v243 = vpack.c.b16 %v234, %v233
    %v244 = vpack.c.b16 %v236, %v235
    %253 = vmatpush.bf16.msra.mxu0 %v244
    %254 = vmatpush.bf16.msra.mxu0 %v243
    %255 = vmatpush.bf16.msra.mxu0 %v242
    %256 = vmatpush.bf16.msra.mxu0 %v241
    %257 = vmatpush.bf16.msra.mxu0 %v240
    %258 = vmatpush.bf16.msra.mxu0 %v239
    %259 = vmatpush.bf16.msra.mxu0 %v238
    %260 = vmatpush.bf16.msra.mxu0 %v237
    %261 = vmatmul.bf16.gmra.mxu0 %v187
    %v262 = vpop.f32.mrf.mxu0
    %v263 = vadd.f32 %v204, %v262
    %v264 = vpop.f32.mrf.mxu0
    %v265 = vadd.f32 %v204, %v264
    %266 = vdwg.mxu0
    %v267 = vmax.f32 %v263, 0.0
    %v268 = vmax.f32 %v265, 0.0
    %v269 = vpack.c.bf16 %v268, %v267
    %v270 = vld [vmem:[#allocation8] sm:$0xf]
    %v271 = vld [vmem:[#allocation8 + $0x4] sm:$0xf]
    %v272 = vld [vmem:[#allocation8 + $0x8] sm:$0xf]
    %v273 = vld [vmem:[#allocation8 + $0xc] sm:$0xf]
    %v274 = vld [vmem:[#allocation8 + $0x10] sm:$0xf]
    %v275 = vld [vmem:[#allocation8 + $0x14] sm:$0xf]
    %v276 = vld [vmem:[#allocation8 + $0x18] sm:$0xf]
    %v277 = vld [vmem:[#allocation8 + $0x1c] sm:$0xf]
    %v278 = vld [vmem:[#allocation8 + $0x20] sm:$0xf]
    %v279 = vld [vmem:[#allocation8 + $0x24] sm:$0xf]
    %v280 = vld [vmem:[#allocation8 + $0x28] sm:$0xf]
    %v281 = vld [vmem:[#allocation8 + $0x2c] sm:$0xf]
    %v282 = vld [vmem:[#allocation8 + $0x30] sm:$0xf]
    %v283 = vld [vmem:[#allocation8 + $0x34] sm:$0xf]
    %v284 = vld [vmem:[#allocation8 + $0x38] sm:$0xf]
    %v285 = vld [vmem:[#allocation8 + $0x3c] sm:$0xf]
    %v286 = vperm.slane %v97, 2
    %v303 = vunpack.c.l.b16 %v270
    %v304 = vunpack.c.l.b16 %v271
    %v305 = vunpack.c.l.b16 %v272
    %v306 = vunpack.c.l.b16 %v273
    %v307 = vunpack.c.l.b16 %v274
    %v308 = vunpack.c.l.b16 %v275
    %v309 = vunpack.c.l.b16 %v276
    %v310 = vunpack.c.l.b16 %v277
    %v311 = vunpack.c.l.b16 %v278
    %v312 = vunpack.c.l.b16 %v279
    %v313 = vunpack.c.l.b16 %v280
    %v314 = vunpack.c.l.b16 %v281
    %v315 = vunpack.c.l.b16 %v282
    %v316 = vunpack.c.l.b16 %v283
    %v317 = vunpack.c.l.b16 %v284
    %v318 = vunpack.c.l.b16 %v285
    %v319 = vpack.c.b16 %v304, %v303
    %v320 = vpack.c.b16 %v306, %v305
    %v321 = vpack.c.b16 %v308, %v307
    %v322 = vpack.c.b16 %v310, %v309
    %v323 = vpack.c.b16 %v312, %v311
    %v324 = vpack.c.b16 %v314, %v313
    %v325 = vpack.c.b16 %v316, %v315
    %v326 = vpack.c.b16 %v318, %v317
    %335 = vmatpush.bf16.msra.mxu0 %v326
    %336 = vmatpush.bf16.msra.mxu0 %v325
    %337 = vmatpush.bf16.msra.mxu0 %v324
    %338 = vmatpush.bf16.msra.mxu0 %v323
    %339 = vmatpush.bf16.msra.mxu0 %v322
    %340 = vmatpush.bf16.msra.mxu0 %v321
    %341 = vmatpush.bf16.msra.mxu0 %v320
    %342 = vmatpush.bf16.msra.mxu0 %v319
    %343 = vmatmul.bf16.gmra.mxu0 %v269
    %v344 = vpop.f32.mrf.mxu0
    %v345 = vadd.f32 %v286, %v344
    %v346 = vpop.f32.mrf.mxu0
    %v347 = vadd.f32 %v286, %v346
    %348 = vdwg.mxu0
    %349 = vst [vmem:[#allocation11] sm:$0xff] %v345
    %350 = vst [vmem:[#allocation11 + $0x8] sm:$0xff] %v347
    // Predicated region
    $region42: #{tpu_custom_call.1} parent=1 // pred_check
      _
    $region43: #{tpu_custom_call.1} parent=1 // pred_check_branch
      %352 = sbr.rel (0) target = $region45
    $region44: #{tpu_custom_call.1} parent=1 // pred_region
      %354 = vsyncadd [#allocation4], 0
      %s355 = sshll.u32 [#allocation11], 4
      %s356 = int_to_ptr.vmem [resolvable:$true] %s355
      %s357 = sshll.u32 %s5, 4
      %s358 = int_to_ptr.hbm [resolvable:$true] %s357
      %363 = dma.vmem_to_hbm [thread:$0]  %s356, 256, %s358, [#allocation4], 128, 128, 8
    $region45: #{tpu_custom_call.1} parent=1 // pred_fallthru
      _
    // Predicated region
    $region46: #{tpu_custom_call.1} parent=1 // pred_check
      _
    $region47: #{tpu_custom_call.1} parent=1 // pred_check_branch
      %365 = sbr.rel (0) target = $region49
    $region48: #{tpu_custom_call.1} parent=1 // pred_region
      %367 = dma.done [#allocation4], 256
    $region49: #{tpu_custom_call.1} parent=1 // pred_fallthru
      _
    %368 = vsyncpa [#allocation3], 1
    %369 = vsyncpa [#allocation6], 1
    %370 = vsyncpa [#allocation9], 1
    %371 = vsyncpa [#allocation4], 1

</llo_original>
